<compile_context>
chip_gen: v7x
topology: tpu7x:2x2x1
jax: 0.10.0
libtpu: 0.0.40
codegen_flags: <defaults>
</compile_context>

<pallas_src>
import jax
import jax.numpy as jnp
from jax.experimental import pallas as pl
from jax.experimental.pallas import tpu as pltpu


# --------------------------- fused forward kernel ---------------------------
def fused_lookup_kernel(x_ref, wih_ref, whh_ref, b_ref, ps_ref, lw_ref, lb_ref,
                        out_ref, xproj_sc):
    # x_ref:   (S, B, 2E)   time-major LSTM input
    # wih_ref: (2E, 4H)     fused input weights,  columns = [i | f | g | o]
    # whh_ref: (H, 4H)      fused hidden weights, columns = [i | f | g | o]
    # b_ref:   (1, 4H)      b_ih + b_hh
    # ps_ref:  (B, 3E, 18)  window embeddings (torch.bmm rhs)
    # lw_ref:  (1, O), lb_ref: (1, O)   Linear(1, O)
    # out_ref: (B, O)       log-softmax logits
    # xproj_sc: VMEM (S, B, 4H) scratch holding the hoisted input projection
    S, B, _ = x_ref.shape
    H4 = whh_ref.shape[-1]
    H = H4 // 4
    three_e = ps_ref.shape[1]
    K = H // three_e                       # k_factors (H = 3*K*E)

    # ---- hoisted input projection: one (S*B, 2E) x (2E, 4H) MXU matmul ----
    x2d = x_ref[...].reshape(S * B, x_ref.shape[-1])
    xp = jnp.dot(x2d, wih_ref[...],
                 preferred_element_type=jnp.float32) + b_ref[...]
    xproj_sc[...] = xp.reshape(S, B, H4)

    w_hh = whh_ref[...]                    # loop-invariant, stays resident

    # ---- LSTM recurrence: only h @ W_hh + gates on the serial path ----
    def step(t, carry):
        h, c = carry
        gates = xproj_sc[t] + jnp.dot(h, w_hh,
                                      preferred_element_type=jnp.float32)
        i = jax.nn.sigmoid(gates[:, 0:H])
        f = jax.nn.sigmoid(gates[:, H:2 * H])
        g = jnp.tanh(gates[:, 2 * H:3 * H])
        o = jax.nn.sigmoid(gates[:, 3 * H:4 * H])
        c_new = f * c + i * g
        h_new = o * jnp.tanh(c_new)
        return h_new, c_new

    h0 = jnp.zeros((B, H), jnp.float32)
    c0 = jnp.zeros((B, H), jnp.float32)
    h_final, _ = jax.lax.fori_loop(0, S, step, (h0, c0))

    # ---- score tail: bmm (VPU broadcast-mul + sum) + max + linear + lsm ----
    ps = ps_ref[...]                       # (B, 3E, 18)
    ms = None
    for k in range(K):                     # K is tiny & static
        t_k = h_final[:, k * three_e:(k + 1) * three_e]       # (B, 3E)
        rs_k = jnp.sum(t_k[:, :, None] * ps, axis=1)          # (B, 18)
        mk = jnp.max(rs_k, axis=1, keepdims=True)             # (B, 1)
        ms = mk if ms is None else jnp.maximum(ms, mk)

    z = ms * lw_ref[...] + lb_ref[...]                         # (B, O)
    zmax = jnp.max(z, axis=-1, keepdims=True)
    zs = z - zmax
    lse = jnp.log(jnp.sum(jnp.exp(zs), axis=-1, keepdims=True))
    out_ref[...] = zs - lse


def lookup_fused_call(x, w_ih, w_hh, b, ps, lin_w, lin_b):
    S, B, _ = x.shape
    H4 = w_hh.shape[-1]
    O = lin_w.shape[-1]
    return pl.pallas_call(
        fused_lookup_kernel,
        out_shape=jax.ShapeDtypeStruct((B, O), jnp.float32),
        scratch_shapes=[pltpu.VMEM((S, B, H4), jnp.float32)],
    )(x, w_ih, w_hh, b, ps, lin_w, lin_b)


# ------------------------------ parameters -----------------------------------
def make_params(key, vocab_size, embedding_size, output_size, k_factors):
    E, K = embedding_size, k_factors
    H = 3 * K * E
    ks = jax.random.split(key, 8)
    p = {}
    p["embedding"] = jax.random.normal(ks[0], (vocab_size, E), jnp.float32)
    p["pos_embedding"] = jax.random.normal(ks[1], (4 * K - 1, E), jnp.float32)
    # PyTorch LSTM params: W_ih (4H, 2E), W_hh (4H, H), b_ih (4H,), b_hh (4H,)
    s = 1.0 / jnp.sqrt(jnp.float32(H))
    w_ih = jax.random.uniform(ks[2], (4 * H, 2 * E), jnp.float32, -s, s)
    w_hh = jax.random.uniform(ks[3], (4 * H, H), jnp.float32, -s, s)
    b_ih = jax.random.uniform(ks[4], (4 * H,), jnp.float32, -s, s)
    b_hh = jax.random.uniform(ks[5], (4 * H,), jnp.float32, -s, s)
    # fused layout: x @ W_ih -> (., 4H) with gate blocks [i | f | g | o]
    p["w_ih"] = w_ih.T                               # (2E, 4H)
    p["w_hh"] = w_hh.T                               # (H, 4H)
    p["b"] = (b_ih + b_hh).reshape(1, 4 * H)         # (1, 4H)
    # nn.Linear(1, output_size): weight (O, 1), bias (O,)
    lw = jax.random.uniform(ks[6], (output_size, 1), jnp.float32, -1.0, 1.0)
    lb = jax.random.uniform(ks[7], (output_size,), jnp.float32, -1.0, 1.0)
    p["lin_w"] = lw.T                                # (1, O)
    p["lin_b"] = lb.reshape(1, output_size)          # (1, O)
    return p


# ------------------------------- forward --------------------------------------
def lookup_table_pos_forward(params, input1, input2, k_factors, embedding_size):
    B, S = input1.shape
    E = embedding_size

    # embedding lookups (glue; tiny gathers)
    emb1 = params["embedding"][input1]                      # (B, S, E)
    positions = jnp.tile(jnp.arange(S), (B, 1))             # (B, S)
    pos_emb = params["pos_embedding"][positions]            # (B, S, E)
    x = jnp.concatenate([emb1, pos_emb], axis=2)            # (B, S, 2E)
    x = jnp.transpose(x, (1, 0, 2)).astype(jnp.float32)     # (S, B, 2E)

    # embeddings2: 18 sliding windows of width 3 over input2 (single gather)
    windows = input2[:, jnp.arange(18)[:, None] + jnp.arange(3)]  # (B, 18, 3)
    emb2 = params["embedding"][windows]                     # (B, 18, 3, E)
    ps = jnp.transpose(emb2.reshape(B, 18, 3 * E), (0, 2, 1))     # (B, 3E, 18)

    # fused LSTM recurrence + bmm + max + linear + log_softmax in one kernel
    return lookup_fused_call(x, params["w_ih"], params["w_hh"], params["b"],
                             ps, params["lin_w"], params["lin_b"])  # (B, O)


if __name__ == "__main__":
    vocab_size, embedding_size, output_size, k_factors = 32, 8, 16, 2
    B, S = 2, 7          # seq_len must be <= 4*k_factors - 1 = 7 (pos embedding)

    key = jax.random.PRNGKey(0)
    kp, k1, k2 = jax.random.split(key, 3)
    params = make_params(kp, vocab_size, embedding_size, output_size, k_factors)
    input1 = jax.random.randint(k1, (B, S), 0, vocab_size)    # (B, S) int ids
    input2 = jax.random.randint(k2, (B, 20), 0, vocab_size)   # needs >= 20 cols

    logits = lookup_table_pos_forward(params, input1, input2,
                                      k_factors, embedding_size)
    jax.block_until_ready(logits)
    assert logits.shape == (B, output_size)
    print("KERNEL_OK")
</pallas_src>

<mosaic_0001>
module attributes {stable_mosaic.version = 11 : i64} {
  func.func @fused_lookup_kernel(%arg0: memref<7x2x16xf32, #tpu.memory_space<vmem>>, %arg1: memref<16x192xf32, #tpu.memory_space<vmem>>, %arg2: memref<48x192xf32, #tpu.memory_space<vmem>>, %arg3: memref<1x192xf32, #tpu.memory_space<vmem>>, %arg4: memref<2x24x18xf32, #tpu.memory_space<vmem>>, %arg5: memref<1x16xf32, #tpu.memory_space<vmem>>, %arg6: memref<1x16xf32, #tpu.memory_space<vmem>>, %arg7: memref<2x16xf32, #tpu.memory_space<vmem>>, %arg8: memref<7x2x192xf32, #tpu.memory_space<vmem>>) attributes {dimension_semantics = [], scalar_prefetch = 0 : i64, scratch_operands = 1 : i64, tpu.core_type = #tpu.core_type<tc>} {
    %c0 = arith.constant 0 : index
    %c0_0 = arith.constant 0 : index
    %c0_1 = arith.constant 0 : index
    %0 = vector.load %arg0[%c0, %c0_0, %c0_1] : memref<7x2x16xf32, #tpu.memory_space<vmem>>, vector<7x2x16xf32>
    %1 = vector.shape_cast %0 : vector<7x2x16xf32> to vector<14x16xf32>
    %c0_2 = arith.constant 0 : index
    %c0_3 = arith.constant 0 : index
    %2 = vector.load %arg1[%c0_2, %c0_3] : memref<16x192xf32, #tpu.memory_space<vmem>>, vector<16x192xf32>
    %cst = arith.constant dense<0.000000e+00> : vector<14x192xf32>
    %3 = tpu.matmul %1, %2, %cst {dimension_numbers = #tpu.dot_dimension_numbers<[1], [0], [0], [1], [0, 0, 1, 1], [], []>} : vector<14x16xf32>, vector<16x192xf32>, vector<14x192xf32> -> vector<14x192xf32>
    %c0_4 = arith.constant 0 : index
    %c0_5 = arith.constant 0 : index
    %4 = vector.load %arg3[%c0_4, %c0_5] : memref<1x192xf32, #tpu.memory_space<vmem>>, vector<1x192xf32>
    %5 = vector.broadcast %4 : vector<1x192xf32> to vector<14x192xf32>
    %6 = arith.addf %3, %5 : vector<14x192xf32>
    %7 = vector.shape_cast %6 : vector<14x192xf32> to vector<7x2x192xf32>
    %c0_6 = arith.constant 0 : index
    %c0_7 = arith.constant 0 : index
    %c0_8 = arith.constant 0 : index
    %8 = vector.load %arg8[%c0_6, %c0_7, %c0_8] : memref<7x2x192xf32, #tpu.memory_space<vmem>>, vector<7x2x192xf32>
    tpu.vector_store %arg8[%c0_6, %c0_7, %c0_8], %7 {strides = array<i32>} : memref<7x2x192xf32, #tpu.memory_space<vmem>>, vector<7x2x192xf32>,
    %c0_9 = arith.constant 0 : index
    %c0_10 = arith.constant 0 : index
    %9 = vector.load %arg2[%c0_9, %c0_10] : memref<48x192xf32, #tpu.memory_space<vmem>>, vector<48x192xf32>
    %cst_11 = arith.constant 0.000000e+00 : f32
    %10 = vector.broadcast %cst_11 : f32 to vector<2x48xf32>
    %cst_12 = arith.constant 0.000000e+00 : f32
    %11 = vector.broadcast %cst_12 : f32 to vector<2x48xf32>
    %c0_i32 = arith.constant 0 : i32
    %c7_i32 = arith.constant 7 : i32
    %12 = arith.addi %c0_i32, %c7_i32 : i32
    %c1_i32 = arith.constant 1 : i32
    %13:2 = scf.for %arg9 = %c0_i32 to %12 step %c1_i32 iter_args(%arg10 = %10, %arg11 = %11) -> (vector<2x48xf32>, vector<2x48xf32>)  : i32 {
      %48 = arith.index_cast %arg9 : i32 to index
      %c0_29 = arith.constant 0 : index
      %c0_30 = arith.constant 0 : index
      %49 = vector.load %arg8[%48, %c0_29, %c0_30] : memref<7x2x192xf32, #tpu.memory_space<vmem>>, vector<1x2x192xf32>
      %50 = vector.shape_cast %49 : vector<1x2x192xf32> to vector<2x192xf32>
      %cst_31 = arith.constant dense<0.000000e+00> : vector<2x192xf32>
      %51 = tpu.matmul %arg10, %9, %cst_31 {dimension_numbers = #tpu.dot_dimension_numbers<[1], [0], [0], [1], [0, 0, 1, 1], [], []>} : vector<2x48xf32>, vector<48x192xf32>, vector<2x192xf32> -> vector<2x192xf32>
      %52 = arith.addf %50, %51 : vector<2x192xf32>
      %53 = vector.extract_strided_slice %52 {offsets = [0, 0], sizes = [2, 48], strides = [1, 1]} : vector<2x192xf32> to vector<2x48xf32>
      %54 = arith.negf %53 : vector<2x48xf32>
      %55 = math.exp %54 : vector<2x48xf32>
      %cst_32 = arith.constant 1.000000e+00 : f32
      %56 = vector.broadcast %cst_32 : f32 to vector<2x48xf32>
      %57 = arith.addf %56, %55 : vector<2x48xf32>
      %58 = arith.divf %56, %57 : vector<2x48xf32>
      %59 = vector.extract_strided_slice %52 {offsets = [0, 48], sizes = [2, 48], strides = [1, 1]} : vector<2x192xf32> to vector<2x48xf32>
      %60 = arith.negf %59 : vector<2x48xf32>
      %61 = math.exp %60 : vector<2x48xf32>
      %cst_33 = arith.constant 1.000000e+00 : f32
      %62 = vector.broadcast %cst_33 : f32 to vector<2x48xf32>
      %63 = arith.addf %62, %61 : vector<2x48xf32>
      %64 = arith.divf %62, %63 : vector<2x48xf32>
      %65 = vector.extract_strided_slice %52 {offsets = [0, 96], sizes = [2, 48], strides = [1, 1]} : vector<2x192xf32> to vector<2x48xf32>
      %66 = math.tanh %65 : vector<2x48xf32>
      %67 = vector.extract_strided_slice %52 {offsets = [0, 144], sizes = [2, 48], strides = [1, 1]} : vector<2x192xf32> to vector<2x48xf32>
      %68 = arith.negf %67 : vector<2x48xf32>
      %69 = math.exp %68 : vector<2x48xf32>
      %cst_34 = arith.constant 1.000000e+00 : f32
      %70 = vector.broadcast %cst_34 : f32 to vector<2x48xf32>
      %71 = arith.addf %70, %69 : vector<2x48xf32>
      %72 = arith.divf %70, %71 : vector<2x48xf32>
      %73 = arith.mulf %64, %arg11 : vector<2x48xf32>
      %74 = arith.mulf %58, %66 : vector<2x48xf32>
      %75 = arith.addf %73, %74 : vector<2x48xf32>
      %76 = math.tanh %75 : vector<2x48xf32>
      %77 = arith.mulf %72, %76 : vector<2x48xf32>
      scf.yield %77, %75 : vector<2x48xf32>, vector<2x48xf32>
    }
    %c7_i32_13 = arith.constant 7 : i32
    %c0_14 = arith.constant 0 : index
    %c0_15 = arith.constant 0 : index
    %c0_16 = arith.constant 0 : index
    %14 = vector.load %arg4[%c0_14, %c0_15, %c0_16] : memref<2x24x18xf32, #tpu.memory_space<vmem>>, vector<2x24x18xf32>
    %15 = vector.extract_strided_slice %13#0 {offsets = [0, 0], sizes = [2, 24], strides = [1, 1]} : vector<2x48xf32> to vector<2x24xf32>
    %16 = vector.shape_cast %15 : vector<2x24xf32> to vector<2x24x1xf32>
    %17 = vector.broadcast %16 : vector<2x24x1xf32> to vector<2x24x18xf32>
    %18 = arith.mulf %17, %14 : vector<2x24x18xf32>
    %cst_17 = arith.constant dense<0.000000e+00> : vector<2x18xf32>
    %19 = vector.multi_reduction <add>, %18, %cst_17 [1] : vector<2x24x18xf32> to vector<2x18xf32>
    %cst_18 = arith.constant dense<0xFF800000> : vector<2xf32>
    %20 = vector.multi_reduction <maximumf>, %19, %cst_18 [1] : vector<2x18xf32> to vector<2xf32>
    %21 = vector.shape_cast %20 : vector<2xf32> to vector<2x1xf32>
    %22 = vector.extract_strided_slice %13#0 {offsets = [0, 24], sizes = [2, 24], strides = [1, 1]} : vector<2x48xf32> to vector<2x24xf32>
    %23 = vector.shape_cast %22 : vector<2x24xf32> to vector<2x24x1xf32>
    %24 = vector.broadcast %23 : vector<2x24x1xf32> to vector<2x24x18xf32>
    %25 = arith.mulf %24, %14 : vector<2x24x18xf32>
    %cst_19 = arith.constant dense<0.000000e+00> : vector<2x18xf32>
    %26 = vector.multi_reduction <add>, %25, %cst_19 [1] : vector<2x24x18xf32> to vector<2x18xf32>
    %cst_20 = arith.constant dense<0xFF800000> : vector<2xf32>
    %27 = vector.multi_reduction <maximumf>, %26, %cst_20 [1] : vector<2x18xf32> to vector<2xf32>
    %28 = vector.shape_cast %27 : vector<2xf32> to vector<2x1xf32>
    %29 = arith.maximumf %21, %28 : vector<2x1xf32>
    %c0_21 = arith.constant 0 : index
    %c0_22 = arith.constant 0 : index
    %30 = vector.load %arg5[%c0_21, %c0_22] : memref<1x16xf32, #tpu.memory_space<vmem>>, vector<1x16xf32>
    %31 = vector.broadcast %29 : vector<2x1xf32> to vector<2x16xf32>
    %32 = vector.broadcast %30 : vector<1x16xf32> to vector<2x16xf32>
    %33 = arith.mulf %31, %32 : vector<2x16xf32>
    %c0_23 = arith.constant 0 : index
    %c0_24 = arith.constant 0 : index
    %34 = vector.load %arg6[%c0_23, %c0_24] : memref<1x16xf32, #tpu.memory_space<vmem>>, vector<1x16xf32>
    %35 = vector.broadcast %34 : vector<1x16xf32> to vector<2x16xf32>
    %36 = arith.addf %33, %35 : vector<2x16xf32>
    %cst_25 = arith.constant dense<0xFF800000> : vector<2xf32>
    %37 = vector.multi_reduction <maximumf>, %36, %cst_25 [1] : vector<2x16xf32> to vector<2xf32>
    %38 = vector.shape_cast %37 : vector<2xf32> to vector<2x1xf32>
    %39 = vector.broadcast %38 : vector<2x1xf32> to vector<2x16xf32>
    %40 = arith.subf %36, %39 : vector<2x16xf32>
    %41 = math.exp %40 : vector<2x16xf32>
    %cst_26 = arith.constant dense<0.000000e+00> : vector<2xf32>
    %42 = vector.multi_reduction <add>, %41, %cst_26 [1] : vector<2x16xf32> to vector<2xf32>
    %43 = vector.shape_cast %42 : vector<2xf32> to vector<2x1xf32>
    %44 = math.log %43 : vector<2x1xf32>
    %45 = vector.broadcast %44 : vector<2x1xf32> to vector<2x16xf32>
    %46 = arith.subf %40, %45 : vector<2x16xf32>
    %c0_27 = arith.constant 0 : index
    %c0_28 = arith.constant 0 : index
    %47 = vector.load %arg7[%c0_27, %c0_28] : memref<2x16xf32, #tpu.memory_space<vmem>>, vector<2x16xf32>
    tpu.vector_store %arg7[%c0_27, %c0_28], %46 {strides = array<i32>} : memref<2x16xf32, #tpu.memory_space<vmem>>, vector<2x16xf32>,
    return
  }
}

</mosaic_0001>

<llo_original>
// kernel: tpu_custom_call.1
$region0: #{tpu_custom_call.1}
  #allocation0 [shape = 'u32[]', space=smem, size = 0x4, offset = 0x4, fixed_abs, tag = 'smem constant byte address 0x4 - core index']
  #allocation1 [shape = 'u32[144,128]{1,0:T(1,128)}', space=vmem, size = 0x12000, scoped, tag = 'internal scratch']
  #allocation2 [shape = 'f32[7,2,192]{2,1,0:T(2,128)}', space=vmem, size = 0x3800, scoped, tag = 'scratch operand']
  %s0 = inlined_call_operand.vmem [shape: f32[7,2,16], index: 0, kind: input, shape index: {}]
  %s1 = inlined_call_operand.vmem [shape: f32[16,192], index: 1, kind: input, shape index: {}]
  %s2 = inlined_call_operand.hbm [shape: f32[48,192], index: 2, kind: input, shape index: {}]
  %s3 = inlined_call_operand.vmem [shape: f32[1,192], index: 3, kind: input, shape index: {}]
  %s4 = inlined_call_operand.vmem [shape: f32[2,24,18], index: 4, kind: input, shape index: {}]
  %s5 = inlined_call_operand.vmem [shape: f32[1,16], index: 5, kind: input, shape index: {}]
  %s6 = inlined_call_operand.vmem [shape: f32[1,16], index: 6, kind: input, shape index: {}]
  %s7 = inlined_call_operand.hbm [shape: f32[2,16], index: 7, kind: output, shape index: {}]
  %s8 = sld [smem:[#allocation0]]
  $region49: #{tpu_custom_call.1} parent=0
    _
  %s10 = ssub.s32 1, %s8
  %s11 = scalar_select 0, %s10, %s8
  $region1: #{tpu_custom_call.1} parent=0
    #allocation3 [shape = 'u8[49152]{0}', space=vmem, size = 0xc000, scoped, tag = 'input window, operand 2, single buffered']
    #allocation4 [shape = 's32[1]{0}', space=sflag, size = 0x4, scoped, tag = 'scoped memory for tpu_custom_call.1']
    #allocation5 [shape = 's32[1]{0}', space=sflag, size = 0x4, scoped, tag = 'scoped memory for tpu_custom_call.1']
    #allocation6 [shape = 'u8[1024]{0}', space=vmem, size = 0x400, scoped, tag = 'output window, operand 0, single buffered']
    %12 = vsyncpa [#allocation4], 0
    %13 = vsyncpa [#allocation5], 0
    // Predicated region
    $region2: #{tpu_custom_call.1} parent=1 // pred_check
      _
    $region3: #{tpu_custom_call.1} parent=1 // pred_check_branch
      %15 = sbr.rel (0) target = $region5
    $region4: #{tpu_custom_call.1} parent=1 // pred_region
      _
    $region5: #{tpu_custom_call.1} parent=1 // pred_fallthru
      _
    // Predicated region
    $region6: #{tpu_custom_call.1} parent=1 // pred_check
      _
    $region7: #{tpu_custom_call.1} parent=1 // pred_check_branch
      %17 = sbr.rel (0) target = $region9
    $region8: #{tpu_custom_call.1} parent=1 // pred_region
      _
    $region9: #{tpu_custom_call.1} parent=1 // pred_fallthru
      _
    // Predicated region
    $region10: #{tpu_custom_call.1} parent=1 // pred_check
      _
    $region11: #{tpu_custom_call.1} parent=1 // pred_check_branch
      %19 = sbr.rel (0) target = $region13
    $region12: #{tpu_custom_call.1} parent=1 // pred_region
      %s21 = ssub.s32 1536, 1536
      %22 = vsyncadd [#allocation4], %s21
      %s23 = sshll.u32 [#allocation3], 4
      %s24 = int_to_ptr.vmem [resolvable:$true] %s23
      %29 = dma.hbm_to_vmem [thread:$0]  %s2, 1536, %s24, [#allocation4], 256, 256, 16
    $region13: #{tpu_custom_call.1} parent=1 // pred_fallthru
      _
    // Predicated region
    $region14: #{tpu_custom_call.1} parent=1 // pred_check
      _
    $region15: #{tpu_custom_call.1} parent=1 // pred_check_branch
      %31 = sbr.rel (0) target = $region17
    $region16: #{tpu_custom_call.1} parent=1 // pred_region
      _
    $region17: #{tpu_custom_call.1} parent=1 // pred_fallthru
      _
    // Predicated region
    $region18: #{tpu_custom_call.1} parent=1 // pred_check
      _
    $region19: #{tpu_custom_call.1} parent=1 // pred_check_branch
      %33 = sbr.rel (0) target = $region21
    $region20: #{tpu_custom_call.1} parent=1 // pred_region
      _
    $region21: #{tpu_custom_call.1} parent=1 // pred_fallthru
      _
    // Predicated region
    $region22: #{tpu_custom_call.1} parent=1 // pred_check
      _
    $region23: #{tpu_custom_call.1} parent=1 // pred_check_branch
      %35 = sbr.rel (0) target = $region25
    $region24: #{tpu_custom_call.1} parent=1 // pred_region
      _
    $region25: #{tpu_custom_call.1} parent=1 // pred_fallthru
      _
    // Predicated region
    $region26: #{tpu_custom_call.1} parent=1 // pred_check
      _
    $region27: #{tpu_custom_call.1} parent=1 // pred_check_branch
      %37 = sbr.rel (0) target = $region29
    $region28: #{tpu_custom_call.1} parent=1 // pred_region
      _
    $region29: #{tpu_custom_call.1} parent=1 // pred_fallthru
      _
    // Predicated region
    $region30: #{tpu_custom_call.1} parent=1 // pred_check
      _
    $region31: #{tpu_custom_call.1} parent=1 // pred_check_branch
      %39 = sbr.rel (0) target = $region33
    $region32: #{tpu_custom_call.1} parent=1 // pred_region
      %40 = dma.done [#allocation4], 1536
    $region33: #{tpu_custom_call.1} parent=1 // pred_fallthru
      _
    %v41 = vld [vmem:[%s0] sm:$0x3]
    %v42 = vld [vmem:[%s0 + $0x2] sm:$0x3]
    %v43 = vld [vmem:[%s0 + $0x4] sm:$0x3]
    %v44 = vld [vmem:[%s0 + $0x6] sm:$0x3]
    %v45 = vld [vmem:[%s0 + $0x8] sm:$0x3]
    %v46 = vld [vmem:[%s0 + $0xa] sm:$0x3]
    %v47 = vld [vmem:[%s0 + $0xc] sm:$0x3]
    %v48 = vld [vmem:[%s1] sm:$0xff]
    %v49 = vld [vmem:[%s1 + $0x8] sm:$0xff]
    %v50 = vld [vmem:[%s1 + $0x10] sm:$0xff]
    %v51 = vld [vmem:[%s1 + $0x18] sm:$0xff]
    %v52 = vld [vmem:[%s3] sm:$0x3]
    %v54 = vlaneseq
    %v55 = vshrl.u32 %v54, 7
    %v56 = vsub.s32 0, %v55
    %v57 = vrot.slane %v52, %v56
    %v58 = vlaneseq
    %v59 = vshrl.u32 %v58, 7
    %v60 = vsub.s32 1, %v59
    %v61 = vrot.slane %v52, %v60
    %v71 = vcombine.low %v41, %v42
    %v72 = vcombine.low %v43, %v44
    %v74 = vunpack.c.l.s4 1983009808
    %v75 = vunpack.c.0.s8 %v74
    %v76 = vlaneseq
    %v77 = vshrl.u32 %v76, 7
    %v78 = vsub.s32 %v75, %v77
    %v79 = vrot.slane %v71, %v78
    %v81 = vunpack.c.l.s4 1983009808
    %v82 = vunpack.c.0.s8 %v81
    %v83 = vlaneseq
    %v84 = vshrl.u32 %v83, 7
    %v85 = vsub.s32 %v82, %v84
    %v86 = vrot.slane %v72, %v85
    %v87 = vcombine.low %v79, %v86
    %v88 = vcombine.low %v45, %v46
    %v90 = vunpack.c.l.s4 1983009808
    %v91 = vunpack.c.0.s8 %v90
    %v92 = vlaneseq
    %v93 = vshrl.u32 %v92, 7
    %v94 = vsub.s32 %v91, %v93
    %v95 = vrot.slane %v88, %v94
    %v97 = vunpack.c.l.s4 1983009808
    %v98 = vunpack.c.0.s8 %v97
    %v99 = vlaneseq
    %v100 = vshrl.u32 %v99, 7
    %v101 = vsub.s32 %v98, %v100
    %v102 = vrot.slane %v47, %v101
    %v103 = vcombine.low %v95, %v102
    %vm104 = vcmask 130048
    %v105 = vsel %vm104, %v87, 0
    %v107 = vsel %vm104, %v103, 0
    %109 = vmatprep.subr.mxu0 %v49
    %110 = vmatpush1.msra.mxu0 %v48
    %111 = vmatprep.subr.mxu0 %v51
    %112 = vmatpush1.msra.mxu0 %v50
    %113 = vmatprep.subr.mxu0 0.0
    %114 = vmatpush1.msra.mxu0 0.0
    %115 = vmatprep.subr.mxu0 0.0
    %116 = vmatpush1.msra.mxu0 0.0
    %117 = vmatprep.subr.mxu0 0.0
    %118 = vmatpush1.msra.mxu0 0.0
    %119 = vmatprep.subr.mxu0 0.0
    %120 = vmatpush1.msra.mxu0 0.0
    %121 = vmatprep.subr.mxu0 0.0
    %122 = vmatpush1.msra.mxu0 0.0
    %123 = vmatprep.subr.mxu0 0.0
    %124 = vmatpush1.msra.mxu0 0.0
    %125 = vmatprep.subr.mxu0 0.0
    %126 = vmatpush1.msra.mxu0 0.0
    %127 = vmatprep.subr.mxu0 0.0
    %128 = vmatpush1.msra.mxu0 0.0
    %129 = vmatprep.subr.mxu0 0.0
    %130 = vmatpush1.msra.mxu0 0.0
    %131 = vmatprep.subr.mxu0 0.0
    %132 = vmatpush1.msra.mxu0 0.0
    %133 = vmatprep.subr.mxu0 0.0
    %134 = vmatpush1.msra.mxu0 0.0
    %135 = vmatprep.subr.mxu0 0.0
    %136 = vmatpush1.msra.mxu0 0.0
    %137 = vmatprep.subr.mxu0 0.0
    %138 = vmatpush1.msra.mxu0 0.0
    %139 = vmatprep.subr.mxu0 0.0
    %140 = vmatpush1.msra.mxu0 0.0
    %141 = vmatprep.subr.mxu0 0.0
    %142 = vmatpush1.msra.mxu0 0.0
    %143 = vmatprep.subr.mxu0 0.0
    %144 = vmatpush1.msra.mxu0 0.0
    %145 = vmatprep.subr.mxu0 0.0
    %146 = vmatpush1.msra.mxu0 0.0
    %147 = vmatprep.subr.mxu0 0.0
    %148 = vmatpush1.msra.mxu0 0.0
    %149 = vmatprep.subr.mxu0 0.0
    %150 = vmatpush1.msra.mxu0 0.0
    %151 = vmatprep.subr.mxu0 0.0
    %152 = vmatpush1.msra.mxu0 0.0
    %153 = vmatprep.subr.mxu0 0.0
    %154 = vmatpush1.msra.mxu0 0.0
    %155 = vmatprep.subr.mxu0 0.0
    %156 = vmatpush1.msra.mxu0 0.0
    %157 = vmatprep.subr.mxu0 0.0
    %158 = vmatpush1.msra.mxu0 0.0
    %159 = vmatprep.subr.mxu0 0.0
    %160 = vmatpush1.msra.mxu0 0.0
    %161 = vmatprep.subr.mxu0 0.0
    %162 = vmatpush1.msra.mxu0 0.0
    %163 = vmatprep.subr.mxu0 0.0
    %164 = vmatpush1.msra.mxu0 0.0
    %165 = vmatprep.subr.mxu0 0.0
    %166 = vmatpush1.msra.mxu0 0.0
    %167 = vmatprep.subr.mxu0 0.0
    %168 = vmatpush1.msra.mxu0 0.0
    %169 = vmatprep.subr.mxu0 0.0
    %170 = vmatpush1.msra.mxu0 0.0
    %171 = vmatprep.subr.mxu0 0.0
    %172 = vmatpush1.msra.mxu0 0.0
    %173 = vmatprep.mubr.f32.mxu0 0.0
    %174 = vmatmul.mubr.f32.gmra.mrb[0].mxu0 %v105
    %v175 = vpop.f32.mrb[0].mxu0
    %v176 = vadd.f32 %v57, %v175
    %v177 = vpop.f32.mrb[0].mxu0
    %v178 = vadd.f32 %v61, %v177
    %179 = vmatprep.mubr.f32.mxu0 0.0
    %180 = vmatmul.mubr.f32.gmra.mrb[0].mxu0 %v107
    %v181 = vpop.f32.mrb[0].mxu0
    %v182 = vadd.f32 %v57, %v181
    %v183 = vpop.f32.mrb[0].mxu0
    %v184 = vadd.f32 %v61, %v183
    %185 = vdwg.mxu0
    %v190 = vcombine.low %v176, %v178
    %v191 = vcombine.high %v176, %v178
    %v193 = vunpack.c.l.s4 1983009808
    %v194 = vunpack.c.0.s8 %v193
    %v195 = vlaneseq
    %v196 = vshrl.u32 %v195, 7
    %v197 = vsub.s32 %v194, %v196
    %v198 = vrot.slane %v190, %v197
    %v200 = vunpack.c.l.s4 1983009808
    %v201 = vunpack.c.0.s8 %v200
    %v202 = vlaneseq
    %v203 = vshrl.u32 %v202, 7
    %v204 = vsub.s32 %v201, %v203
    %v205 = vrot.slane %v191, %v204
    %v206 = vcombine.high %v198, %v198
    %v207 = vcombine.high %v205, %v205
    %v208 = vcombine.low %v182, %v184
    %v209 = vcombine.high %v182, %v184
    %v211 = vunpack.c.l.s4 1983009808
    %v212 = vunpack.c.0.s8 %v211
    %v213 = vlaneseq
    %v214 = vshrl.u32 %v213, 7
    %v215 = vsub.s32 %v212, %v214
    %v216 = vrot.slane %v208, %v215
    %v218 = vunpack.c.l.s4 1983009808
    %v219 = vunpack.c.0.s8 %v218
    %v220 = vlaneseq
    %v221 = vshrl.u32 %v220, 7
    %v222 = vsub.s32 %v219, %v221
    %v223 = vrot.slane %v209, %v222
    %v224 = vcombine.high %v216, %v216
    %vm232 = vcmask 1041408
    %vm233 = vcmask 519170
    %vm234 = vmor %vm233, %vm232
    %235 = vst.msk [vmem:[#allocation2] sm:$0xf] %vm234, %v198
    %236 = vst.msk [vmem:[#allocation2 + $0x4] sm:$0xf] %vm234, %v206
    %237 = vst.msk [vmem:[#allocation2 + $0x8] sm:$0xf] %vm234, %v205
    %238 = vst.msk [vmem:[#allocation2 + $0xc] sm:$0xf] %vm234, %v207
    %239 = vst.msk [vmem:[#allocation2 + $0x10] sm:$0xf] %vm234, %v216
    %240 = vst.msk [vmem:[#allocation2 + $0x14] sm:$0xf] %vm234, %v224
    %241 = vst.msk [vmem:[#allocation2 + $0x18] sm:$0xf] %vm234, %v223
    %v242 = vld [vmem:[#allocation3] sm:$0xff]
    %v243 = vld [vmem:[#allocation3 + $0x8] sm:$0xff]
    %v244 = vld [vmem:[#allocation3 + $0x10] sm:$0xff]
    %v245 = vld [vmem:[#allocation3 + $0x18] sm:$0xff]
    %v246 = vld [vmem:[#allocation3 + $0x20] sm:$0xff]
    %v247 = vld [vmem:[#allocation3 + $0x28] sm:$0xff]
    %v248 = vld [vmem:[#allocation3 + $0x30] sm:$0xff]
    %v249 = vld [vmem:[#allocation3 + $0x38] sm:$0xff]
    %v250 = vld [vmem:[#allocation3 + $0x40] sm:$0xff]
    %v251 = vld [vmem:[#allocation3 + $0x48] sm:$0xff]
    %v252 = vld [vmem:[#allocation3 + $0x50] sm:$0xff]
    %v253 = vld [vmem:[#allocation3 + $0x58] sm:$0xff]
    loop: start=0, step=1, limit=7
    $region34: #{tpu_custom_call.1} parent=1 // loop_pre_header
      _
    $region35: #{tpu_custom_call.1} parent=1 // loop_header
      %s255 = sphi 0, %s259
      %p256 = scmp.ge.s32.totalorder %s255, 7
      %v260 = vphi 0.0, %v390
      %v261 = vphi 0.0, %v384
    $region36: #{tpu_custom_call.1} parent=1 // loop_header_branch
      %258 = sbr.rel (%p256) target = $region40
    $region37: #{tpu_custom_call.1} parent=1 // loop_body
      %s262 = smul.u32 %s255, 2
      %s263 = smul.addr %s262, 2
      %s264 = scalar_lea.vmem [#allocation2], %s263
      %v265 = vld [vmem:[%s264] sm:$0xf]
      %vm266 = vcmask 392192
      %v268 = vsel %vm266, %v260, 0
      %270 = vmatprep.subr.mxu0 %v243
      %271 = vmatpush1.msra.mxu0 %v242
      %272 = vmatprep.subr.mxu0 %v245
      %273 = vmatpush1.msra.mxu0 %v244
      %274 = vmatprep.subr.mxu0 %v247
      %275 = vmatpush1.msra.mxu0 %v246
      %276 = vmatprep.subr.mxu0 %v249
      %277 = vmatpush1.msra.mxu0 %v248
      %278 = vmatprep.subr.mxu0 %v251
      %279 = vmatpush1.msra.mxu0 %v250
      %280 = vmatprep.subr.mxu0 %v253
      %281 = vmatpush1.msra.mxu0 %v252
      %282 = vmatprep.subr.mxu0 0.0
      %283 = vmatpush1.msra.mxu0 0.0
      %284 = vmatprep.subr.mxu0 0.0
      %285 = vmatpush1.msra.mxu0 0.0
      %286 = vmatprep.subr.mxu0 0.0
      %287 = vmatpush1.msra.mxu0 0.0
      %288 = vmatprep.subr.mxu0 0.0
      %289 = vmatpush1.msra.mxu0 0.0
      %290 = vmatprep.subr.mxu0 0.0
      %291 = vmatpush1.msra.mxu0 0.0
      %292 = vmatprep.subr.mxu0 0.0
      %293 = vmatpush1.msra.mxu0 0.0
      %294 = vmatprep.subr.mxu0 0.0
      %295 = vmatpush1.msra.mxu0 0.0
      %296 = vmatprep.subr.mxu0 0.0
      %297 = vmatpush1.msra.mxu0 0.0
      %298 = vmatprep.subr.mxu0 0.0
      %299 = vmatpush1.msra.mxu0 0.0
      %300 = vmatprep.subr.mxu0 0.0
      %301 = vmatpush1.msra.mxu0 0.0
      %302 = vmatprep.subr.mxu0 0.0
      %303 = vmatpush1.msra.mxu0 0.0
      %304 = vmatprep.subr.mxu0 0.0
      %305 = vmatpush1.msra.mxu0 0.0
      %306 = vmatprep.subr.mxu0 0.0
      %307 = vmatpush1.msra.mxu0 0.0
      %308 = vmatprep.subr.mxu0 0.0
      %309 = vmatpush1.msra.mxu0 0.0
      %310 = vmatprep.subr.mxu0 0.0
      %311 = vmatpush1.msra.mxu0 0.0
      %312 = vmatprep.subr.mxu0 0.0
      %313 = vmatpush1.msra.mxu0 0.0
      %314 = vmatprep.subr.mxu0 0.0
      %315 = vmatpush1.msra.mxu0 0.0
      %316 = vmatprep.subr.mxu0 0.0
      %317 = vmatpush1.msra.mxu0 0.0
      %318 = vmatprep.subr.mxu0 0.0
      %319 = vmatpush1.msra.mxu0 0.0
      %320 = vmatprep.subr.mxu0 0.0
      %321 = vmatpush1.msra.mxu0 0.0
      %322 = vmatprep.subr.mxu0 0.0
      %323 = vmatpush1.msra.mxu0 0.0
      %324 = vmatprep.subr.mxu0 0.0
      %325 = vmatpush1.msra.mxu0 0.0
      %326 = vmatprep.subr.mxu0 0.0
      %327 = vmatpush1.msra.mxu0 0.0
      %328 = vmatprep.subr.mxu0 0.0
      %329 = vmatpush1.msra.mxu0 0.0
      %330 = vmatprep.subr.mxu0 0.0
      %331 = vmatpush1.msra.mxu0 0.0
      %332 = vmatprep.subr.mxu0 0.0
      %333 = vmatpush1.msra.mxu0 0.0
      %334 = vmatprep.mubr.f32.mxu0 0.0
      %335 = vmatmul.mubr.f32.gmra.mrb[0].mxu0 %v268
      %v336 = vpop.f32.mrb[0].mxu0
      %v337 = vadd.f32 0.0, %v336
      %v338 = vpop.f32.mrb[0].mxu0
      %v339 = vadd.f32 0.0, %v338
      %340 = vdwg.mxu0
      %v343 = vcombine.low %v337, %v339
      %v345 = vunpack.c.l.s4 1983009808
      %v346 = vunpack.c.0.s8 %v345
      %v347 = vlaneseq
      %v348 = vshrl.u32 %v347, 7
      %v349 = vsub.s32 %v346, %v348
      %v350 = vrot.slane %v343, %v349
      %v352 = vadd.f32 %v265, %v350
      %v353 = vxor.u32 %v352, 2147483648
      %v354 = vmul.f32 %v353, 1.442695
      %v355 = vpow.pop %v354
      %v356 = vadd.f32 %v355, 1.0
      %v357 = vrcp.pop %v356
      %v358 = vmul.f32 1.0, %v357
      %v359 = vtanh.pop %v352
      %361 = vrot.lane.b32.xlu0 %v352, 112
      %v362 = vpop.permute.xlu0 %361
      %v363 = vrot.slane %v362, 2
      %v365 = vxor.u32 %v363, 2147483648
      %v366 = vmul.f32 %v365, 1.442695
      %v367 = vpow.pop %v366
      %v368 = vadd.f32 %v367, 1.0
      %v369 = vrcp.pop %v368
      %v370 = vmul.f32 1.0, %v369
      %v371 = vmul.f32 %v358, %v261
      %373 = vrot.lane.b32.xlu0 %v359, 32
      %v374 = vpop.permute.xlu0 %373
      %v375 = vrot.slane %v374, 2
      %vm376 = vcmask 261120
      %v377 = vsel %vm376, %v374, %v375
      %v379 = vmul.f32 %v358, %v377
      %381 = vrot.lane.b32.xlu0 %v379, 48
      %v382 = vpop.permute.xlu0 %381
      %v384 = vadd.f32 %v371, %v382
      %v385 = vtanh.pop %v384
      %387 = vrot.lane.b32.xlu0 %v385, 80
      %v388 = vpop.permute.xlu0 %387
      %v390 = vmul.f32 %v370, %v388
    $region38: #{tpu_custom_call.1} parent=1 // loop_footer
      %s259 = sadd.s32 1, %s255
    $region39: #{tpu_custom_call.1} parent=1 // loop_footer_branch
      %254 = sbr.rel target = $region35
    $region40: #{tpu_custom_call.1} parent=1 // loop_exit
      _
    %v391 = vld [vmem:[%s4] sm:$0xff]
    %v392 = vld [vmem:[%s4 + $0x8] sm:$0xff]
    %v393 = vld [vmem:[%s4 + $0x10] sm:$0xff]
    %v394 = vld [vmem:[%s4 + $0x18] sm:$0xff]
    %v395 = vld [vmem:[%s4 + $0x20] sm:$0xff]
    %v396 = vld [vmem:[%s4 + $0x28] sm:$0xff]
    %v397 = vlaneseq
    %v398 = vshrl.u32 %v397, 7
    %v399 = vsub.s32 0, %v398
    %v400 = vrot.slane %v260, %v399
    %402 = vbcast.lane.b32.xlu0 %v400, 256
    %v403 = vpop.permute.xlu0 %402
    %s405 = sor.u32 256, 8
    %406 = vbcast.lane.b32.xlu0 %v400, %s405
    %v407 = vpop.permute.xlu0 %406
    %s409 = sor.u32 256, 16
    %410 = vbcast.lane.b32.xlu0 %v400, %s409
    %v411 = vpop.permute.xlu0 %410
    %v412 = vlaneseq
    %v413 = vshrl.u32 %v412, 7
    %v414 = vsub.s32 1, %v413
    %v415 = vrot.slane %v260, %v414
    %417 = vbcast.lane.b32.xlu0 %v415, 256
    %v418 = vpop.permute.xlu0 %417
    %s420 = sor.u32 256, 8
    %421 = vbcast.lane.b32.xlu0 %v415, %s420
    %v422 = vpop.permute.xlu0 %421
    %s424 = sor.u32 256, 16
    %425 = vbcast.lane.b32.xlu0 %v415, %s424
    %v426 = vpop.permute.xlu0 %425
    %v427 = vmul.f32 %v403, %v391
    %v428 = vmul.f32 %v407, %v392
    %v429 = vmul.f32 %v411, %v393
    %v430 = vmul.f32 %v418, %v394
    %v431 = vmul.f32 %v422, %v395
    %v432 = vmul.f32 %v426, %v396
    %vm433 = vcmask 146432
    %v434 = vsel %vm433, %v427, 0.0
    %v435 = vsel %vm433, %v428, 0.0
    %v436 = vadd.f32 %v434, %v435
    %v437 = vsel %vm433, %v429, 0.0
    %v438 = vadd.f32 %v436, %v437
    %v439 = vrot.slane %v438, 4
    %v440 = vadd.f32 %v438, %v439
    %v441 = vrot.slane %v440, 2
    %v442 = vadd.f32 %v440, %v441
    %v443 = vrot.slane %v442, 1
    %v444 = vadd.f32 %v442, %v443
    %v445 = vsel %vm433, %v430, 0.0
    %v446 = vsel %vm433, %v431, 0.0
    %v447 = vadd.f32 %v445, %v446
    %v448 = vsel %vm433, %v432, 0.0
    %v449 = vadd.f32 %v447, %v448
    %v450 = vrot.slane %v449, 4
    %v451 = vadd.f32 %v449, %v450
    %v452 = vrot.slane %v451, 2
    %v453 = vadd.f32 %v451, %v452
    %v454 = vrot.slane %v453, 1
    %v455 = vadd.f32 %v453, %v454
    %vm458 = vcmask 1041409
    %v459 = vsel %vm458, %v455, %v444
    %vm461 = vcmask 140288
    %v462 = vsel %vm461, %v459, -inf
    %463 = vmax.xlane.f32.xlu0 %v462
    %v464 = vpop.xlane.xlu0 %463
    %s466 = sor.u32 256, 24
    %467 = vbcast.lane.b32.xlu0 %v400, %s466
    %v468 = vpop.permute.xlu0 %467
    %s470 = sor.u32 256, 32
    %471 = vbcast.lane.b32.xlu0 %v400, %s470
    %v472 = vpop.permute.xlu0 %471
    %s474 = sor.u32 256, 40
    %475 = vbcast.lane.b32.xlu0 %v400, %s474
    %v476 = vpop.permute.xlu0 %475
    %s478 = sor.u32 256, 24
    %479 = vbcast.lane.b32.xlu0 %v415, %s478
    %v480 = vpop.permute.xlu0 %479
    %s482 = sor.u32 256, 32
    %483 = vbcast.lane.b32.xlu0 %v415, %s482
    %v484 = vpop.permute.xlu0 %483
    %s486 = sor.u32 256, 40
    %487 = vbcast.lane.b32.xlu0 %v415, %s486
    %v488 = vpop.permute.xlu0 %487
    %v489 = vmul.f32 %v468, %v391
    %v490 = vmul.f32 %v472, %v392
    %v491 = vmul.f32 %v476, %v393
    %v492 = vmul.f32 %v480, %v394
    %v493 = vmul.f32 %v484, %v395
    %v494 = vmul.f32 %v488, %v396
    %v495 = vsel %vm433, %v489, 0.0
    %v496 = vsel %vm433, %v490, 0.0
    %v497 = vadd.f32 %v495, %v496
    %v498 = vsel %vm433, %v491, 0.0
    %v499 = vadd.f32 %v497, %v498
    %v500 = vrot.slane %v499, 4
    %v501 = vadd.f32 %v499, %v500
    %v502 = vrot.slane %v501, 2
    %v503 = vadd.f32 %v501, %v502
    %v504 = vrot.slane %v503, 1
    %v505 = vadd.f32 %v503, %v504
    %v506 = vsel %vm433, %v492, 0.0
    %v507 = vsel %vm433, %v493, 0.0
    %v508 = vadd.f32 %v506, %v507
    %v509 = vsel %vm433, %v494, 0.0
    %v510 = vadd.f32 %v508, %v509
    %v511 = vrot.slane %v510, 4
    %v512 = vadd.f32 %v510, %v511
    %v513 = vrot.slane %v512, 2
    %v514 = vadd.f32 %v512, %v513
    %v515 = vrot.slane %v514, 1
    %v516 = vadd.f32 %v514, %v515
    %v519 = vsel %vm458, %v516, %v505
    %v521 = vsel %vm461, %v519, -inf
    %522 = vmax.xlane.f32.xlu0 %v521
    %v523 = vpop.xlane.xlu0 %522
    %v524 = vmax.f32 %v464, %v523
    %v525 = vld [vmem:[%s5] sm:$0x1]
    %v527 = vlaneseq
    %v528 = vshrl.u32 %v527, 7
    %v529 = vsub.s32 0, %v528
    %v530 = vrot.slane %v525, %v529
    %v532 = vmul.f32 %v524, %v530
    %v533 = vld [vmem:[%s6] sm:$0x1]
    %v535 = vlaneseq
    %v536 = vshrl.u32 %v535, 7
    %v537 = vsub.s32 0, %v536
    %v538 = vrot.slane %v533, %v537
    %v540 = vadd.f32 %v532, %v538
    %vm541 = vcmask 123904
    %v542 = vsel %vm541, %v540, -inf
    %543 = vmax.xlane.f32.xlu0 %v542
    %v544 = vpop.xlane.xlu0 %543
    %v545 = vsub.f32 %v540, %v544
    %v546 = vmul.f32 %v545, 1.442695
    %v547 = vpow.pop %v546
    %v548 = vsel %vm541, %v547, 0.0
    %549 = vadd.xlane.f32.xlu0 %v548
    %v550 = vpop.xlane.xlu0 %549
    %v551 = vlog2.pop %v550
    %v552 = vmul.f32 %v551, 0.6931472
    %v553 = vsub.f32 %v545, %v552
    %554 = vst.msk [vmem:[#allocation6] sm:$0x3] %vm541, %v553
    // Predicated region
    $region41: #{tpu_custom_call.1} parent=1 // pred_check
      _
    $region42: #{tpu_custom_call.1} parent=1 // pred_check_branch
      %556 = sbr.rel (0) target = $region44
    $region43: #{tpu_custom_call.1} parent=1 // pred_region
      %s558 = ssub.s32 32, 32
      %559 = vsyncadd [#allocation5], %s558
      %s561 = sshll.u32 [#allocation6], 4
      %s562 = int_to_ptr.vmem [resolvable:$true] %s561
      %564 = dma.vmem_to_hbm [thread:$0]  %s562, 32, %s7, [#allocation5]
    $region44: #{tpu_custom_call.1} parent=1 // pred_fallthru
      _
    // Predicated region
    $region45: #{tpu_custom_call.1} parent=1 // pred_check
      _
    $region46: #{tpu_custom_call.1} parent=1 // pred_check_branch
      %566 = sbr.rel (0) target = $region48
    $region47: #{tpu_custom_call.1} parent=1 // pred_region
      %567 = dma.done [#allocation5], 32
    $region48: #{tpu_custom_call.1} parent=1 // pred_fallthru
      _
    %568 = vsyncpa [#allocation4], 1
    %569 = vsyncpa [#allocation5], 1

</llo_original>
